<compile_context>
chip_gen: v7x
topology: tpu7x:2x2x1
jax: 0.10.0
libtpu: 0.0.40
codegen_flags: <defaults>
</compile_context>

<pallas_src>
import jax
import jax.numpy as jnp
from jax.experimental import pallas as pl
from jax.experimental.pallas import tpu as pltpu

C_IN = 256
C_OUT = 64
LANE = 128


def _conv1x1_sigmoid_kernel(w_ref, b_ref, x_ref, o_ref):
    # w_ref: (C_OUT, C_IN), b_ref: (C_OUT, 1), x_ref: (C_IN, tn), o_ref: (C_OUT, tn)
    acc = jnp.dot(
        w_ref[...], x_ref[...],
        preferred_element_type=jnp.float32,
        precision=jax.lax.Precision.DEFAULT,   # explicit: single-pass class, not HIGHEST
    )
    acc = acc + b_ref[...]                     # lane-broadcast of per-channel bias
    # sigmoid(x) = 1 / (1 + exp(-x)); exp and the approx reciprocal both live on
    # the EUP slot, keeping the epilogue off the VPU.
    o_ref[...] = pl.reciprocal(1.0 + jnp.exp(-acc), approx=True).astype(o_ref.dtype)


def _default_tn_max():
    # Best-effort chip detection. v7x-class TCs have 64 MiB VMEM and ~3.2 TB/s
    # HBM, so a 4 MiB x-block (tn=4096, ~10 MiB total double-buffered) halves
    # the per-step-overhead fraction and still fits comfortably. v5e/v6e
    # (128 MiB VMEM, slower HBM) stay at 2048, which is already ~85% of the
    # measured HBM roofline and safe under v5e's 16 MiB scoped-VMEM default.
    try:
        info = pltpu.get_tpu_info()
        vmem = getattr(info, "vmem_capacity_bytes", 0)
        if vmem and vmem <= 64 * 1024 * 1024:
            return 4096
    except Exception:
        pass
    return 2048


def attention_heat_map(x_nchw, weight, bias, *, tn_max=None):
    """sigmoid(Conv2d(256, 64, kernel_size=1)(x)) on NCHW input.

    x_nchw : (N, 256, H, W) float32
    weight : (64, 256, 1, 1) float32   (PyTorch conv weight layout)
    bias   : (64,) float32
    returns: (N, 64, H, W) float32
    """
    N, C, H, W = x_nchw.shape
    assert C == C_IN
    HW = H * W

    if tn_max is None:
        tn_max = _default_tn_max()
    tn_max = max(LANE, (tn_max // LANE) * LANE)

    # Spatial tile: the full extent if it fits (single block per image, block
    # shape == array dim so no (8,128) issue), else the largest 128-multiple
    # tile <= tn_max with a cdiv grid and masked partial last block.
    tn = HW if HW <= tn_max else tn_max
    num_j = pl.cdiv(HW, tn)

    # Layout plumbing: pure (free) reshapes of contiguous tensors.
    x3d = x_nchw.reshape(N, C_IN, HW)
    w2d = weight.reshape(C_OUT, C_IN)            # (64, 256)
    b2d = bias.reshape(C_OUT, 1)                 # (64, 1)

    cost = pl.CostEstimate(
        flops=2 * N * C_OUT * C_IN * HW,
        transcendentals=N * C_OUT * HW,
        bytes_accessed=4 * (N * C_IN * HW + N * C_OUT * HW + C_OUT * C_IN + C_OUT),
    )

    # TODO(synk): for tiny feature maps (grid steps < ~4 per core) it can be
    # cheaper to let XLA fuse this op instead of paying Pallas call overhead.
    out3d = pl.pallas_call(
        _conv1x1_sigmoid_kernel,
        out_shape=jax.ShapeDtypeStruct((N, C_OUT, HW), x_nchw.dtype),
        grid_spec=pltpu.PrefetchScalarGridSpec(
            num_scalar_prefetch=0,
            grid=(N, num_j),
            in_specs=[
                pl.BlockSpec((C_OUT, C_IN), lambda n, j: (0, 0)),        # weight (resident)
                pl.BlockSpec((C_OUT, 1), lambda n, j: (0, 0)),           # bias   (resident)
                pl.BlockSpec((None, C_IN, tn), lambda n, j: (n, 0, j)),  # x tile
            ],
            out_specs=pl.BlockSpec((None, C_OUT, tn), lambda n, j: (n, 0, j)),
        ),
        compiler_params=pltpu.CompilerParams(
            dimension_semantics=("parallel", "parallel")),
        cost_estimate=cost,
    )(w2d, b2d, x3d)

    return out3d.reshape(N, C_OUT, H, W)


if __name__ == "__main__":
    key = jax.random.PRNGKey(0)
    kx, kw, kb = jax.random.split(key, 3)

    # Deterministic parameter init (PyTorch Conv2d default-style uniform bound).
    bound = 1.0 / (C_IN ** 0.5)
    weight = jax.random.uniform(kw, (C_OUT, C_IN, 1, 1), jnp.float32, -bound, bound)
    bias = jax.random.uniform(kb, (C_OUT,), jnp.float32, -bound, bound)
    w2d_ref = weight.reshape(C_OUT, C_IN)

    def reference(x):
        # High-precision f32 reference; the kernel uses the default (bf16-class)
        # MXU path, hence the loosened tolerance below.
        return jax.nn.sigmoid(
            jnp.einsum("nchw,oc->nohw", x, w2d_ref,
                       precision=jax.lax.Precision.HIGHEST)
            + bias[None, :, None, None])

    # Test 1: small 8x8 spatial (HW=64 <= tn -> single full-extent block).
    x = jax.random.normal(kx, (2, C_IN, 8, 8), dtype=jnp.float32)
    out = attention_heat_map(x, weight, bias)
    jax.block_until_ready(out)
    assert out.shape == (2, C_OUT, 8, 8)
    assert jnp.allclose(out, reference(x), atol=5e-3, rtol=5e-3)

    # Test 2: non-multiple-of-128 spatial, full-extent block path (HW=240).
    x2 = jax.random.normal(kx, (1, C_IN, 12, 20), dtype=jnp.float32)
    out2 = attention_heat_map(x2, weight, bias)
    jax.block_until_ready(out2)
    assert out2.shape == (1, C_OUT, 12, 20)
    assert jnp.allclose(out2, reference(x2), atol=5e-3, rtol=5e-3)

    # Test 3: force tn_max=128 to exercise the cdiv grid + masked partial last
    # block path (HW=240 -> two 128-wide blocks, last one partially valid).
    out3 = attention_heat_map(x2, weight, bias, tn_max=128)
    jax.block_until_ready(out3)
    assert out3.shape == (1, C_OUT, 12, 20)
    assert jnp.allclose(out3, reference(x2), atol=5e-3, rtol=5e-3)

    print("KERNEL_OK")
</pallas_src>

<mosaic_0001>
module attributes {stable_mosaic.version = 11 : i64} {
  func.func @_conv1x1_sigmoid_kernel(%arg0: i32, %arg1: i32, %arg2: memref<64x256xf32, #tpu.memory_space<vmem>>, %arg3: memref<64x1xf32, #tpu.memory_space<vmem>>, %arg4: memref<1x256x64xf32, #tpu.memory_space<vmem>>, %arg5: memref<1x64x64xf32, #tpu.memory_space<vmem>>) attributes {dimension_semantics = [#tpu.dimension_semantics<parallel>, #tpu.dimension_semantics<parallel>], iteration_bounds = array<i64: 2, 1>, scalar_prefetch = 0 : i64, scratch_operands = 0 : i64, tpu.core_type = #tpu.core_type<tc>, window_params = [{pipeline_mode = #tpu.pipeline_mode<synchronous>, transform_indices = @transform_0, window_bounds = array<i64: 64, 256>}, {pipeline_mode = #tpu.pipeline_mode<synchronous>, transform_indices = @transform_1, window_bounds = array<i64: 64, 1>}, {transform_indices = @transform_2, window_bounds = array<i64: 1, 256, 64>}, {transform_indices = @transform_3, window_bounds = array<i64: 1, 64, 64>}]} {
    %c0 = arith.constant 0 : index
    %c0_0 = arith.constant 0 : index
    %0 = vector.load %arg2[%c0, %c0_0] : memref<64x256xf32, #tpu.memory_space<vmem>>, vector<64x256xf32>
    %c0_1 = arith.constant 0 : index
    %c0_2 = arith.constant 0 : index
    %c0_3 = arith.constant 0 : index
    %1 = vector.load %arg4[%c0_1, %c0_2, %c0_3] : memref<1x256x64xf32, #tpu.memory_space<vmem>>, vector<1x256x64xf32>
    %2 = vector.shape_cast %1 : vector<1x256x64xf32> to vector<256x64xf32>
    %cst = arith.constant dense<0.000000e+00> : vector<64x64xf32>
    %3 = tpu.matmul %0, %2, %cst {dimension_numbers = #tpu.dot_dimension_numbers<[1], [0], [0], [1], [0, 0, 1, 1], [], []>} : vector<64x256xf32>, vector<256x64xf32>, vector<64x64xf32> -> vector<64x64xf32>
    %c0_4 = arith.constant 0 : index
    %c0_5 = arith.constant 0 : index
    %4 = vector.load %arg3[%c0_4, %c0_5] : memref<64x1xf32, #tpu.memory_space<vmem>>, vector<64x1xf32>
    %5 = vector.broadcast %4 : vector<64x1xf32> to vector<64x64xf32>
    %6 = arith.addf %3, %5 : vector<64x64xf32>
    %cst_6 = arith.constant 0.000000e+00 : f32
    %7 = vector.broadcast %cst_6 : f32 to vector<64x64xf32>
    %8 = arith.subf %7, %6 : vector<64x64xf32>
    %9 = math.exp %8 : vector<64x64xf32>
    %cst_7 = arith.constant 1.000000e+00 : f32
    %10 = vector.broadcast %cst_7 : f32 to vector<64x64xf32>
    %11 = arith.addf %10, %9 : vector<64x64xf32>
    %12 = tpu.reciprocal %11 {approx = true} : vector<64x64xf32> -> vector<64x64xf32>
    %c0_8 = arith.constant 0 : index
    %c0_9 = arith.constant 0 : index
    %c0_10 = arith.constant 0 : index
    %13 = vector.load %arg5[%c0_8, %c0_9, %c0_10] : memref<1x64x64xf32, #tpu.memory_space<vmem>>, vector<1x64x64xf32>
    %14 = vector.shape_cast %13 : vector<1x64x64xf32> to vector<64x64xf32>
    %15 = vector.shape_cast %12 : vector<64x64xf32> to vector<1x64x64xf32>
    tpu.vector_store %arg5[%c0_8, %c0_9, %c0_10], %15 {strides = array<i32>} : memref<1x64x64xf32, #tpu.memory_space<vmem>>, vector<1x64x64xf32>,
    return
  }
  func.func @transform_0(%arg0: i32, %arg1: i32) -> (i32, i32) {
    %c0_i32 = arith.constant 0 : i32
    %c0_i32_0 = arith.constant 0 : i32
    %c0_i32_1 = arith.constant 0 : i32
    return %c0_i32, %c0_i32_0 : i32, i32
  }
  func.func @transform_1(%arg0: i32, %arg1: i32) -> (i32, i32) {
    %c0_i32 = arith.constant 0 : i32
    %c0_i32_0 = arith.constant 0 : i32
    %c0_i32_1 = arith.constant 0 : i32
    return %c0_i32, %c0_i32_0 : i32, i32
  }
  func.func @transform_2(%arg0: i32, %arg1: i32) -> (i32, i32, i32) {
    %c0_i32 = arith.constant 0 : i32
    %c0_i32_0 = arith.constant 0 : i32
    return %arg0, %c0_i32, %arg1 : i32, i32, i32
  }
  func.func @transform_3(%arg0: i32, %arg1: i32) -> (i32, i32, i32) {
    %c0_i32 = arith.constant 0 : i32
    %c0_i32_0 = arith.constant 0 : i32
    return %arg0, %c0_i32, %arg1 : i32, i32, i32
  }
}

</mosaic_0001>

<llo_original>
// kernel: tpu_custom_call.1
$region0: #{tpu_custom_call.1}
  #allocation0 [shape = 'u32[]', space=smem, size = 0x4, offset = 0x4, fixed_abs, tag = 'smem constant byte address 0x4 - core index']
  #allocation1 [shape = 'u32[144,128]{1,0:T(1,128)}', space=vmem, size = 0x12000, scoped, tag = 'internal scratch']
  %s0 = inlined_call_operand.vmem [shape: f32[64,256], index: 0, kind: input, shape index: {}]
  %s1 = inlined_call_operand.vmem [shape: f32[64,1], index: 1, kind: input, shape index: {}]
  %s2 = inlined_call_operand.vmem [shape: f32[2,256,64], index: 2, kind: input, shape index: {}]
  %s3 = inlined_call_operand.hbm [shape: f32[2,64,64], index: 3, kind: output, shape index: {}]
  %s4 = sld [smem:[#allocation0]]
  $region45: #{tpu_custom_call.1} parent=0
    _
  %s6 = ssub.s32 1, %s4
  %s7 = scalar_select 0, %s6, %s4
  $region1: #{tpu_custom_call.1} parent=0
    #allocation2 [shape = 'u8[65536]{0}', space=vmem, size = 0x10000, scoped, tag = 'output window, operand 0']
    #allocation3 [shape = 's32[2]{0}', space=sflag, size = 0x8, scoped, tag = 'scoped memory for tpu_custom_call.1']
    %8 = vsyncpa [#allocation3], 0
    %s9 = scalar_lea.sflag [#allocation3], 1
    %10 = vsyncpa %s9, 0
    loop: start=0, step=1, limit=4
    $region2: #{tpu_custom_call.1} parent=1 // loop_pre_header
      _
    $region3: #{tpu_custom_call.1} parent=1 // loop_header
      %s12 = sphi 0, %s16
      %p13 = scmp.ge.s32.totalorder %s12, 4
      %s19 = sphi 0, %s31
      %s20 = sphi 0, %s27
      %s21 = sphi 0, %s19
      %s22 = sphi 0, %s20
      %s23 = sphi 0, %s21
      %s24 = sphi 0, %s22
      %s32 = sphi 0, %s32
      %s34 = sphi 0, %s32
      %s35 = sphi 0, %s34
      %s49 = sphi 0, %s35
      %s53 = sphi 0, %s53
      %s55 = sphi 0, %s53
      %s56 = sphi 0, %s55
      %s70 = sphi 0, %s56
      %s78 = sphi 0, %s80
      %s81 = sphi 0, %s78
      %s82 = sphi 0, %s81
      %s98 = sphi 0, %s82
      %s106 = sphi 0, %s108
      %s109 = sphi 0, %s106
      %s110 = sphi 0, %s109
      %s126 = sphi 0, %s110
    $region4: #{tpu_custom_call.1} parent=1 // loop_header_branch
      %15 = sbr.rel (%p13) target = $region8
    $region5: #{tpu_custom_call.1} parent=1 // loop_body
      %s17 = ssub.s32 %s12, 1
      %s18 = ssub.s32 %s12, 2
      %s25 = sadd.s32 1, %s20
      %p26 = scmp.ge.s32.totalorder %s25, 1
      %s27 = scalar_select %p26, 0, %s25
      %s28 = sadd.s32 1, %s19
      %s29 = scalar_select %p26, %s28, %s19
      %p30 = scmp.ge.s32.totalorder %s29, 2
      %s31 = scalar_select %p30, 0, %s29
      %s33 = sadd.s32 %s32, 1
      %p36 = scmp.eq.s32.totalorder %s12, 1
      %p37 = scmp.ne.s32.totalorder %s32, %s34
      %p38 = scmp.eq.s32.totalorder %s12, 0
      %p39 = por %p37, %p38
      %p40 = scmp.ne.s32.totalorder %s32, %s34
      %p41 = scmp.eq.s32.totalorder %s17, 1
      %p42 = por %p40, %p41
      %p43 = scmp.ne.s32.totalorder %s34, %s35
      %p44 = scmp.eq.s32.totalorder %s17, 0
      %p45 = por %p43, %p44
      %p46 = scmp.ne.s32.totalorder %s34, %s35
      %p47 = scmp.eq.s32.totalorder %s18, 1
      %p48 = por %p46, %p47
      %p50 = scmp.ne.s32.totalorder %s35, %s49
      %p51 = scmp.eq.s32.totalorder %s18, 0
      %p52 = por %p50, %p51
      %s54 = sadd.s32 %s53, 1
      %p57 = scmp.eq.s32.totalorder %s12, 1
      %p58 = scmp.ne.s32.totalorder %s53, %s55
      %p59 = scmp.eq.s32.totalorder %s12, 0
      %p60 = por %p58, %p59
      %p61 = scmp.ne.s32.totalorder %s53, %s55
      %p62 = scmp.eq.s32.totalorder %s17, 1
      %p63 = por %p61, %p62
      %p64 = scmp.ne.s32.totalorder %s55, %s56
      %p65 = scmp.eq.s32.totalorder %s17, 0
      %p66 = por %p64, %p65
      %p67 = scmp.ne.s32.totalorder %s55, %s56
      %p68 = scmp.eq.s32.totalorder %s18, 1
      %p69 = por %p67, %p68
      %p71 = scmp.ne.s32.totalorder %s56, %s70
      %p72 = scmp.eq.s32.totalorder %s18, 0
      %p73 = por %p71, %p72
      %s74 = ssub.s32 %s19, %s31
      %s75 = ssub.s32 %s20, %s27
      %s76 = sor.u32 %s74, %s75
      %p77 = scmp.eq.s32.totalorder %s76, 0
      %s79 = sadd.s32 %s78, 1
      %s80 = scalar_select %p77, %s78, %s79
      %p83 = pneg %p77
      %p84 = scmp.eq.s32.totalorder %s12, 1
      %p85 = por %p83, %p84
      %p86 = scmp.ne.s32.totalorder %s78, %s81
      %p87 = scmp.eq.s32.totalorder %s12, 0
      %p88 = por %p86, %p87
      %p89 = scmp.ne.s32.totalorder %s78, %s81
      %p90 = scmp.eq.s32.totalorder %s17, 1
      %p91 = por %p89, %p90
      %p92 = scmp.ne.s32.totalorder %s81, %s82
      %p93 = scmp.eq.s32.totalorder %s17, 0
      %p94 = por %p92, %p93
      %p95 = scmp.ne.s32.totalorder %s81, %s82
      %p96 = scmp.eq.s32.totalorder %s18, 1
      %p97 = por %p95, %p96
      %p99 = scmp.ne.s32.totalorder %s82, %s98
      %p100 = scmp.eq.s32.totalorder %s18, 0
      %p101 = por %p99, %p100
      %s102 = ssub.s32 %s19, %s31
      %s103 = ssub.s32 %s20, %s27
      %s104 = sor.u32 %s102, %s103
      %p105 = scmp.eq.s32.totalorder %s104, 0
      %s107 = sadd.s32 %s106, 1
      %s108 = scalar_select %p105, %s106, %s107
      %p111 = pneg %p105
      %p112 = scmp.eq.s32.totalorder %s12, 1
      %p113 = por %p111, %p112
      %p114 = scmp.ne.s32.totalorder %s106, %s109
      %p115 = scmp.eq.s32.totalorder %s12, 0
      %p116 = por %p114, %p115
      %p117 = scmp.ne.s32.totalorder %s106, %s109
      %p118 = scmp.eq.s32.totalorder %s17, 1
      %p119 = por %p117, %p118
      %p120 = scmp.ne.s32.totalorder %s109, %s110
      %p121 = scmp.eq.s32.totalorder %s17, 0
      %p122 = por %p120, %p121
      %p123 = scmp.ne.s32.totalorder %s109, %s110
      %p124 = scmp.eq.s32.totalorder %s18, 1
      %p125 = por %p123, %p124
      %p127 = scmp.ne.s32.totalorder %s110, %s126
      %p128 = scmp.eq.s32.totalorder %s18, 0
      %p129 = por %p127, %p128
      %p130 = scmp.le.s32.totalorder 1, %s12
      %p131 = scmp.lt.s32.totalorder %s12, 3
      %p132 = pnand %p130, %p131
      %p133 = pneg %p132
      // Predicated region
      $region9: #{tpu_custom_call.1} parent=5 // pred_check
        _
      $region10: #{tpu_custom_call.1} parent=5 // pred_check_branch
        %135 = sbr.rel (%p132) target = $region12
      $region11: #{tpu_custom_call.1} parent=5 // pred_region
        %s136 = ssub.s32 %s12, 1
        // Predicated region
        $region13: #{tpu_custom_call.1} parent=11 // pred_check
          %p137 = pneg %p45
        $region14: #{tpu_custom_call.1} parent=11 // pred_check_branch
          %139 = sbr.rel (%p137) target = $region16
        $region15: #{tpu_custom_call.1} parent=11 // pred_region
          _
        $region16: #{tpu_custom_call.1} parent=11 // pred_fallthru
          _
        // Predicated region
        $region17: #{tpu_custom_call.1} parent=11 // pred_check
          %p140 = pneg %p66
        $region18: #{tpu_custom_call.1} parent=11 // pred_check_branch
          %142 = sbr.rel (%p140) target = $region20
        $region19: #{tpu_custom_call.1} parent=11 // pred_region
          _
        $region20: #{tpu_custom_call.1} parent=11 // pred_fallthru
          _
      $region12: #{tpu_custom_call.1} parent=5 // pred_fallthru
        _
      %p143 = scmp.lt.s32.totalorder %s12, 2
      // Predicated region
      $region21: #{tpu_custom_call.1} parent=5 // pred_check
        %p144 = pneg %p143
      $region22: #{tpu_custom_call.1} parent=5 // pred_check_branch
        %146 = sbr.rel (%p144) target = $region24
      $region23: #{tpu_custom_call.1} parent=5 // pred_region
        // Predicated region
        $region25: #{tpu_custom_call.1} parent=23 // pred_check
          %p147 = pneg %p88
        $region26: #{tpu_custom_call.1} parent=23 // pred_check_branch
          %149 = sbr.rel (%p147) target = $region28
        $region27: #{tpu_custom_call.1} parent=23 // pred_region
          %p150 = scmp.lt.s32.totalorder %s19, 1
          %s151 = scalar_select %p150, %s19, 1
          %p152 = scmp.lt.s32.totalorder %s20, 0
          %s153 = scalar_select %p152, %s20, 0
          %s154 = smul.addr %s151, 32
          %s155 = sadd.s32 %s153, %s154
          %s156 = smul.addr %s155, 8
          %s157 = scalar_lea.vmem %s2, %s156
        $region28: #{tpu_custom_call.1} parent=23 // pred_fallthru
          _
      $region24: #{tpu_custom_call.1} parent=5 // pred_fallthru
        _
      %p158 = scmp.le.s32.totalorder 1, %s12
      %p159 = scmp.lt.s32.totalorder %s12, 3
      %p160 = pnand %p158, %p159
      %p161 = pneg %p160
      // Predicated region
      $region29: #{tpu_custom_call.1} parent=5 // pred_check
        _
      $region30: #{tpu_custom_call.1} parent=5 // pred_check_branch
        %163 = sbr.rel (%p160) target = $region32
      $region31: #{tpu_custom_call.1} parent=5 // pred_region
        %s164 = ssub.s32 %s12, 1
        %p165 = pneg %p45
        %p166 = pneg %p42
        %p167 = pneg %p66
        %p168 = pneg %p63
        %p169 = scmp.lt.s32.totalorder %s21, 1
        %s170 = scalar_select %p169, %s21, 1
        %p171 = scmp.lt.s32.totalorder %s22, 0
        %s172 = scalar_select %p171, %s22, 0
        %s173 = smul.addr %s170, 32
        %s174 = sadd.s32 %s172, %s173
        %s175 = smul.addr %s174, 8
        %s176 = scalar_lea.vmem %s2, %s175
        %p177 = pneg %p94
        %p178 = pneg %p91
        %p179 = pneg %p122
        %p180 = pneg %p119
        %s181 = sand.u32 %s109, 1
        %s182 = scalar_lea.sflag [#allocation3], %s181
        %s183 = sand.u32 %s109, 1
        %s184 = smul.addr %s183, 64
        %s185 = scalar_lea.vmem [#allocation2], %s184
        %p186 = scmp.lt.s32.totalorder %s21, 1
        %s187 = scalar_select %p186, %s21, 1
        %p188 = scmp.lt.s32.totalorder %s22, 0
        %s189 = scalar_select %p188, %s22, 0
        %s190 = smul.addr %s187, 32
        %s191 = sadd.s32 %s189, %s190
        %s192 = smul.addr %s191, 8
        %s193 = scalar_lea.vmem %s2, %s192
        %v194 = vld [vmem:[%s0] sm:$0xff]
        %v195 = vld [vmem:[%s0 + $0x8] sm:$0xff]
        %v196 = vld [vmem:[%s0 + $0x10] sm:$0xff]
        %v197 = vld [vmem:[%s0 + $0x18] sm:$0xff]
        %v198 = vld [vmem:[%s0 + $0x20] sm:$0xff]
        %v199 = vld [vmem:[%s0 + $0x28] sm:$0xff]
        %v200 = vld [vmem:[%s0 + $0x30] sm:$0xff]
        %v201 = vld [vmem:[%s0 + $0x38] sm:$0xff]
        %v202 = vld [vmem:[%s0 + $0x40] sm:$0xff]
        %v203 = vld [vmem:[%s0 + $0x48] sm:$0xff]
        %v204 = vld [vmem:[%s0 + $0x50] sm:$0xff]
        %v205 = vld [vmem:[%s0 + $0x58] sm:$0xff]
        %v206 = vld [vmem:[%s0 + $0x60] sm:$0xff]
        %v207 = vld [vmem:[%s0 + $0x68] sm:$0xff]
        %v208 = vld [vmem:[%s0 + $0x70] sm:$0xff]
        %v209 = vld [vmem:[%s0 + $0x78] sm:$0xff]
        %v210 = vld [vmem:[%s193] sm:$0xff]
        %v211 = vld [vmem:[%s193 + $0x8] sm:$0xff]
        %v212 = vld [vmem:[%s193 + $0x10] sm:$0xff]
        %v213 = vld [vmem:[%s193 + $0x18] sm:$0xff]
        %v214 = vld [vmem:[%s193 + $0x20] sm:$0xff]
        %v215 = vld [vmem:[%s193 + $0x28] sm:$0xff]
        %v216 = vld [vmem:[%s193 + $0x30] sm:$0xff]
        %v217 = vld [vmem:[%s193 + $0x38] sm:$0xff]
        %v218 = vld [vmem:[%s193 + $0x40] sm:$0xff]
        %v219 = vld [vmem:[%s193 + $0x48] sm:$0xff]
        %v220 = vld [vmem:[%s193 + $0x50] sm:$0xff]
        %v221 = vld [vmem:[%s193 + $0x58] sm:$0xff]
        %v222 = vld [vmem:[%s193 + $0x60] sm:$0xff]
        %v223 = vld [vmem:[%s193 + $0x68] sm:$0xff]
        %v224 = vld [vmem:[%s193 + $0x70] sm:$0xff]
        %v225 = vld [vmem:[%s193 + $0x78] sm:$0xff]
        %v226 = vld [vmem:[%s193 + $0x80] sm:$0xff]
        %v227 = vld [vmem:[%s193 + $0x88] sm:$0xff]
        %v228 = vld [vmem:[%s193 + $0x90] sm:$0xff]
        %v229 = vld [vmem:[%s193 + $0x98] sm:$0xff]
        %v230 = vld [vmem:[%s193 + $0xa0] sm:$0xff]
        %v231 = vld [vmem:[%s193 + $0xa8] sm:$0xff]
        %v232 = vld [vmem:[%s193 + $0xb0] sm:$0xff]
        %v233 = vld [vmem:[%s193 + $0xb8] sm:$0xff]
        %v234 = vld [vmem:[%s193 + $0xc0] sm:$0xff]
        %v235 = vld [vmem:[%s193 + $0xc8] sm:$0xff]
        %v236 = vld [vmem:[%s193 + $0xd0] sm:$0xff]
        %v237 = vld [vmem:[%s193 + $0xd8] sm:$0xff]
        %v238 = vld [vmem:[%s193 + $0xe0] sm:$0xff]
        %v239 = vld [vmem:[%s193 + $0xe8] sm:$0xff]
        %v240 = vld [vmem:[%s193 + $0xf0] sm:$0xff]
        %v241 = vld [vmem:[%s193 + $0xf8] sm:$0xff]
        %v242 = vld [vmem:[%s1] sm:$0xff]
        %v243 = vld [vmem:[%s1 + $0x8] sm:$0xff]
        %v244 = vld [vmem:[%s1 + $0x10] sm:$0xff]
        %v245 = vld [vmem:[%s1 + $0x18] sm:$0xff]
        %v246 = vld [vmem:[%s1 + $0x20] sm:$0xff]
        %v247 = vld [vmem:[%s1 + $0x28] sm:$0xff]
        %v248 = vld [vmem:[%s1 + $0x30] sm:$0xff]
        %v249 = vld [vmem:[%s1 + $0x38] sm:$0xff]
        %251 = vset.pattern.permute.xlu0 0
        %252 = vperm.xlu0 %251, %v242
        %v253 = vpop.permute.xlu0 %252
        %256 = vset.pattern.permute.xlu0 0
        %257 = vperm.xlu0 %256, %v243
        %v258 = vpop.permute.xlu0 %257
        %261 = vset.pattern.permute.xlu0 0
        %262 = vperm.xlu0 %261, %v244
        %v263 = vpop.permute.xlu0 %262
        %266 = vset.pattern.permute.xlu0 0
        %267 = vperm.xlu0 %266, %v245
        %v268 = vpop.permute.xlu0 %267
        %271 = vset.pattern.permute.xlu0 0
        %272 = vperm.xlu0 %271, %v246
        %v273 = vpop.permute.xlu0 %272
        %276 = vset.pattern.permute.xlu0 0
        %277 = vperm.xlu0 %276, %v247
        %v278 = vpop.permute.xlu0 %277
        %281 = vset.pattern.permute.xlu0 0
        %282 = vperm.xlu0 %281, %v248
        %v283 = vpop.permute.xlu0 %282
        %286 = vset.pattern.permute.xlu0 0
        %287 = vperm.xlu0 %286, %v249
        %v288 = vpop.permute.xlu0 %287
        %290 = vmatprep.subr.mxu0 0.0
        %291 = vmatpush1.msra.mxu0 %v210
        %292 = vmatprep.subr.mxu0 0.0
        %293 = vmatpush1.msra.mxu0 %v211
        %294 = vmatprep.subr.mxu0 0.0
        %295 = vmatpush1.msra.mxu0 %v212
        %296 = vmatprep.subr.mxu0 0.0
        %297 = vmatpush1.msra.mxu0 %v213
        %298 = vmatprep.subr.mxu0 0.0
        %299 = vmatpush1.msra.mxu0 %v214
        %300 = vmatprep.subr.mxu0 0.0
        %301 = vmatpush1.msra.mxu0 %v215
        %302 = vmatprep.subr.mxu0 0.0
        %303 = vmatpush1.msra.mxu0 %v216
        %304 = vmatprep.subr.mxu0 0.0
        %305 = vmatpush1.msra.mxu0 %v217
        %306 = vmatprep.subr.mxu0 0.0
        %307 = vmatpush1.msra.mxu0 %v218
        %308 = vmatprep.subr.mxu0 0.0
        %309 = vmatpush1.msra.mxu0 %v219
        %310 = vmatprep.subr.mxu0 0.0
        %311 = vmatpush1.msra.mxu0 %v220
        %312 = vmatprep.subr.mxu0 0.0
        %313 = vmatpush1.msra.mxu0 %v221
        %314 = vmatprep.subr.mxu0 0.0
        %315 = vmatpush1.msra.mxu0 %v222
        %316 = vmatprep.subr.mxu0 0.0
        %317 = vmatpush1.msra.mxu0 %v223
        %318 = vmatprep.subr.mxu0 0.0
        %319 = vmatpush1.msra.mxu0 %v224
        %320 = vmatprep.subr.mxu0 0.0
        %321 = vmatpush1.msra.mxu0 %v225
        %322 = vmatprep.subr.mxu0 0.0
        %323 = vmatpush1.msra.mxu0 %v226
        %324 = vmatprep.subr.mxu0 0.0
        %325 = vmatpush1.msra.mxu0 %v227
        %326 = vmatprep.subr.mxu0 0.0
        %327 = vmatpush1.msra.mxu0 %v228
        %328 = vmatprep.subr.mxu0 0.0
        %329 = vmatpush1.msra.mxu0 %v229
        %330 = vmatprep.subr.mxu0 0.0
        %331 = vmatpush1.msra.mxu0 %v230
        %332 = vmatprep.subr.mxu0 0.0
        %333 = vmatpush1.msra.mxu0 %v231
        %334 = vmatprep.subr.mxu0 0.0
        %335 = vmatpush1.msra.mxu0 %v232
        %336 = vmatprep.subr.mxu0 0.0
        %337 = vmatpush1.msra.mxu0 %v233
        %338 = vmatprep.subr.mxu0 0.0
        %339 = vmatpush1.msra.mxu0 %v234
        %340 = vmatprep.subr.mxu0 0.0
        %341 = vmatpush1.msra.mxu0 %v235
        %342 = vmatprep.subr.mxu0 0.0
        %343 = vmatpush1.msra.mxu0 %v236
        %344 = vmatprep.subr.mxu0 0.0
        %345 = vmatpush1.msra.mxu0 %v237
        %346 = vmatprep.subr.mxu0 0.0
        %347 = vmatpush1.msra.mxu0 %v238
        %348 = vmatprep.subr.mxu0 0.0
        %349 = vmatpush1.msra.mxu0 %v239
        %350 = vmatprep.subr.mxu0 0.0
        %351 = vmatpush1.msra.mxu0 %v240
        %352 = vmatprep.subr.mxu0 0.0
        %353 = vmatpush1.msra.mxu0 %v241
        %354 = vmatprep.mubr.f32.mxu0 %v195
        %355 = vmatmul.mubr.f32.gmra.mrb[0].mxu0 %v194
        %v356 = vpop.f32.mrb[0].mxu0
        %v357 = vadd.f32 %v253, %v356
        %v358 = vpop.f32.mrb[0].mxu0
        %359 = vmatprep.mubr.f32.mxu0 %v197
        %360 = vmatmul.mubr.f32.gmra.mrb[0].mxu0 %v196
        %v361 = vpop.f32.mrb[0].mxu0
        %v362 = vadd.f32 %v258, %v361
        %v363 = vpop.f32.mrb[0].mxu0
        %364 = vmatprep.mubr.f32.mxu0 %v199
        %365 = vmatmul.mubr.f32.gmra.mrb[0].mxu0 %v198
        %v366 = vpop.f32.mrb[0].mxu0
        %v367 = vadd.f32 %v263, %v366
        %v368 = vpop.f32.mrb[0].mxu0
        %369 = vmatprep.mubr.f32.mxu0 %v201
        %370 = vmatmul.mubr.f32.gmra.mrb[0].mxu0 %v200
        %v371 = vpop.f32.mrb[0].mxu0
        %v372 = vadd.f32 %v268, %v371
        %v373 = vpop.f32.mrb[0].mxu0
        %374 = vmatprep.mubr.f32.mxu0 %v203
        %375 = vmatmul.mubr.f32.gmra.mrb[0].mxu0 %v202
        %v376 = vpop.f32.mrb[0].mxu0
        %v377 = vadd.f32 %v273, %v376
        %v378 = vpop.f32.mrb[0].mxu0
        %379 = vmatprep.mubr.f32.mxu0 %v205
        %380 = vmatmul.mubr.f32.gmra.mrb[0].mxu0 %v204
        %v381 = vpop.f32.mrb[0].mxu0
        %v382 = vadd.f32 %v278, %v381
        %v383 = vpop.f32.mrb[0].mxu0
        %384 = vmatprep.mubr.f32.mxu0 %v207
        %385 = vmatmul.mubr.f32.gmra.mrb[0].mxu0 %v206
        %v386 = vpop.f32.mrb[0].mxu0
        %v387 = vadd.f32 %v283, %v386
        %v388 = vpop.f32.mrb[0].mxu0
        %389 = vmatprep.mubr.f32.mxu0 %v209
        %390 = vmatmul.mubr.f32.gmra.mrb[0].mxu0 %v208
        %v391 = vpop.f32.mrb[0].mxu0
        %v392 = vadd.f32 %v288, %v391
        %v393 = vpop.f32.mrb[0].mxu0
        %394 = vdwg.mxu0
        %v395 = vsub.f32 0.0, %v357
        %v396 = vsub.f32 0.0, %v362
        %v397 = vsub.f32 0.0, %v367
        %v398 = vsub.f32 0.0, %v372
        %v399 = vsub.f32 0.0, %v377
        %v400 = vsub.f32 0.0, %v382
        %v401 = vsub.f32 0.0, %v387
        %v402 = vsub.f32 0.0, %v392
        %v403 = vmul.f32 %v395, 1.442695
        %v404 = vpow.pop %v403
        %v405 = vmul.f32 %v396, 1.442695
        %v406 = vpow.pop %v405
        %v407 = vmul.f32 %v397, 1.442695
        %v408 = vpow.pop %v407
        %v409 = vmul.f32 %v398, 1.442695
        %v410 = vpow.pop %v409
        %v411 = vmul.f32 %v399, 1.442695
        %v412 = vpow.pop %v411
        %v413 = vmul.f32 %v400, 1.442695
        %v414 = vpow.pop %v413
        %v415 = vmul.f32 %v401, 1.442695
        %v416 = vpow.pop %v415
        %v417 = vmul.f32 %v402, 1.442695
        %v418 = vpow.pop %v417
        %v419 = vadd.f32 %v404, 1.0
        %v420 = vadd.f32 %v406, 1.0
        %v421 = vadd.f32 %v408, 1.0
        %v422 = vadd.f32 %v410, 1.0
        %v423 = vadd.f32 %v412, 1.0
        %v424 = vadd.f32 %v414, 1.0
        %v425 = vadd.f32 %v416, 1.0
        %v426 = vadd.f32 %v418, 1.0
        %v427 = vrcp.pop %v419
        %v428 = vrcp.pop %v420
        %v429 = vrcp.pop %v421
        %v430 = vrcp.pop %v422
        %v431 = vrcp.pop %v423
        %v432 = vrcp.pop %v424
        %v433 = vrcp.pop %v425
        %v434 = vrcp.pop %v426
        %vm435 = vcmask 523264
        %436 = vst.msk [vmem:[%s185] sm:$0xff] %vm435, %v427
        %437 = vst.msk [vmem:[%s185 + $0x8] sm:$0xff] %vm435, %v428
        %438 = vst.msk [vmem:[%s185 + $0x10] sm:$0xff] %vm435, %v429
        %439 = vst.msk [vmem:[%s185 + $0x18] sm:$0xff] %vm435, %v430
        %440 = vst.msk [vmem:[%s185 + $0x20] sm:$0xff] %vm435, %v431
        %441 = vst.msk [vmem:[%s185 + $0x28] sm:$0xff] %vm435, %v432
        %442 = vst.msk [vmem:[%s185 + $0x30] sm:$0xff] %vm435, %v433
        %443 = vst.msk [vmem:[%s185 + $0x38] sm:$0xff] %vm435, %v434
        %s444 = sand.u32 %s109, 1
        %s445 = scalar_lea.sflag [#allocation3], %s444
        %s446 = sand.u32 %s109, 1
        %s447 = smul.addr %s446, 64
        %s448 = scalar_lea.vmem [#allocation2], %s447
        // Predicated region
        $region33: #{tpu_custom_call.1} parent=31 // pred_check
          %p449 = pneg %p119
        $region34: #{tpu_custom_call.1} parent=31 // pred_check_branch
          %451 = sbr.rel (%p449) target = $region36
        $region35: #{tpu_custom_call.1} parent=31 // pred_region
          %s453 = ssub.s32 1024, 1024
          %454 = vsyncadd %s445, %s453
          %s455 = smul.addr %s21, 8
          %s456 = sadd.s32 %s22, %s455
          %s457 = smul.addr %s456, 128
          %s458 = scalar_lea.hbm %s3, %s457
          %s459 = sshll.u32 %s448, 4
          %s460 = int_to_ptr.vmem [resolvable:$true] %s459
          %465 = dma.vmem_to_hbm [thread:$0]  %s460, 1024, %s458, %s445, 128, 128, 8
        $region36: #{tpu_custom_call.1} parent=31 // pred_fallthru
          _
      $region32: #{tpu_custom_call.1} parent=5 // pred_fallthru
        _
      %p466 = scmp.le.s32.totalorder 2, %s12
      // Predicated region
      $region37: #{tpu_custom_call.1} parent=5 // pred_check
        %p467 = pneg %p466
      $region38: #{tpu_custom_call.1} parent=5 // pred_check_branch
        %469 = sbr.rel (%p467) target = $region40
      $region39: #{tpu_custom_call.1} parent=5 // pred_region
        %s470 = ssub.s32 %s12, 2
        // Predicated region
        $region41: #{tpu_custom_call.1} parent=39 // pred_check
          %p471 = pneg %p125
        $region42: #{tpu_custom_call.1} parent=39 // pred_check_branch
          %473 = sbr.rel (%p471) target = $region44
        $region43: #{tpu_custom_call.1} parent=39 // pred_region
          %s474 = sand.u32 %s110, 1
          %s475 = scalar_lea.sflag [#allocation3], %s474
          %s476 = sand.u32 %s110, 1
          %s477 = smul.addr %s476, 64
          %s478 = scalar_lea.vmem [#allocation2], %s477
          %479 = dma.done %s475, 1024
        $region44: #{tpu_custom_call.1} parent=39 // pred_fallthru
          _
      $region40: #{tpu_custom_call.1} parent=5 // pred_fallthru
        _
    $region6: #{tpu_custom_call.1} parent=1 // loop_footer
      %s16 = sadd.s32 1, %s12
    $region7: #{tpu_custom_call.1} parent=1 // loop_footer_branch
      %11 = sbr.rel target = $region3
    $region8: #{tpu_custom_call.1} parent=1 // loop_exit
      _
    %480 = vsyncpa [#allocation3], 1
    %s481 = scalar_lea.sflag [#allocation3], 1
    %482 = vsyncpa %s481, 1

</llo_original>
